<compile_context>
chip_gen: v5e
topology: v5e:2x2
jax: 0.10.0
libtpu: 0.0.40
codegen_flags: <defaults>
</compile_context>

<pallas_src>
import functools
import numpy as np
import jax
import jax.numpy as jnp
from jax.experimental import pallas as pl
from jax.experimental.pallas import tpu as pltpu

MD = 4                      # max displacement for the correlation layer
ND = (2 * MD + 1) ** 2      # 81 cost-volume channels
DTYPE = jnp.bfloat16        # activation / MXU-input dtype (f32 accumulation)


# --------------------------------------------------------------------------
# Small helpers
# --------------------------------------------------------------------------

def _vmem_limit_bytes():
    """Scoped-VMEM limit that physically fits every TPU generation."""
    try:
        cap = int(pltpu.get_tpu_info().vmem_capacity_bytes)
    except Exception:
        cap = 64 * 1024 * 1024      # be conservative (v7x per-core VMEM)
    return int(min(cap * 3 // 4, 96 * 1024 * 1024))


_VMEM_LIMIT = _vmem_limit_bytes()


def _cparams(*sem):
    return pltpu.CompilerParams(dimension_semantics=sem,
                                vmem_limit_bytes=_VMEM_LIMIT)


def _round_up(x, m):
    return ((x + m - 1) // m) * m


def _th_rows(h):
    """Row-tile height for the direct conv kernel: big tiles, but >=2 row
    blocks whenever possible so v7x can shard the grid over both cores."""
    th = min(8, h)
    if h > 1 and pl.cdiv(h, th) < 2:
        th = max(1, th // 2)
    return th


# --------------------------------------------------------------------------
# Direct stride-1 3x3 conv kernel (grouped inputs, fused bias + LeakyReLU)
# --------------------------------------------------------------------------

def _conv3x3_kernel(*refs, ngroups, th, wout, dil, cout, ns):
    xs = refs[:3 * ngroups]                 # 3 row-shifted views per group
    ws = refs[3 * ngroups:4 * ngroups]      # (9, C_g, Cout) weight per group
    b_ref = refs[4 * ngroups]               # (1, Cout) f32 bias
    o_ref = refs[4 * ngroups + 1]           # (1, th, wout, Cout) output
    acc_ref = refs[4 * ngroups + 2]         # (th*wout, Cout) f32 scratch

    acc_ref[...] = jnp.zeros_like(acc_ref)
    for g in range(ngroups):
        w_ref = ws[g]
        for i in range(3):                  # kernel row tap == shifted view i
            x_ref = xs[3 * g + i]
            for j in range(3):              # kernel column tap
                xt = x_ref[0, :, j * dil:j * dil + wout, :]     # (th, wout, Cg)
                a2 = xt.reshape(th * wout, xt.shape[-1])
                acc_ref[...] += jnp.dot(a2, w_ref[3 * i + j],
                                        preferred_element_type=jnp.float32)
    acc = acc_ref[...] + b_ref[...]
    if ns is not None:
        acc = jnp.where(acc >= 0, acc, ns * acc)
    o_ref[0] = acc.reshape(th, wout, cout).astype(o_ref.dtype)


@functools.lru_cache(maxsize=None)
def _conv3x3_call(bsz, hpad, th, wim, dilation, cins, cout, ns, out_dtype):
    ngroups = len(cins)
    wp = wim + 2 * dilation
    in_specs = []
    for cg in cins:
        for _ in range(3):
            in_specs.append(pl.BlockSpec((1, th, wp, cg),
                                         lambda bi, hi: (bi, hi, 0, 0)))
    for cg in cins:
        in_specs.append(pl.BlockSpec((9, cg, cout), lambda bi, hi: (0, 0, 0)))
    in_specs.append(pl.BlockSpec((1, cout), lambda bi, hi: (0, 0)))
    kern = functools.partial(_conv3x3_kernel, ngroups=ngroups, th=th,
                             wout=wim, dil=dilation, cout=cout, ns=ns)
    return pl.pallas_call(
        kern,
        grid=(bsz, hpad // th),
        in_specs=in_specs,
        out_specs=pl.BlockSpec((1, th, wim, cout), lambda bi, hi: (bi, hi, 0, 0)),
        out_shape=jax.ShapeDtypeStruct((bsz, hpad, wim, cout), out_dtype),
        scratch_shapes=[pltpu.VMEM((th * wim, cout), jnp.float32)],
        compiler_params=_cparams("parallel", "parallel"),
    )


def _prep_group(t, hpad, dil=1):
    """Prepare one channel group for the direct 3x3 conv kernel.

    Returns (C, [s0, s1, s2]) where s_i[:, y] = zero_pad(t)[:, y + i*dil],
    each of shape (B, hpad, W + 2*dil, C), bf16.  Only 3 row-shifted views are
    materialized (vs. a 9x im2col) and they are shared by every conv that
    consumes this tensor (DenseNet block, predict_flow, upfeat).
    """
    b, h, w, c = t.shape
    tp = jnp.pad(t.astype(DTYPE), ((0, 0), (dil, dil), (dil, dil), (0, 0)))
    shifts = []
    for i in range(3):
        s = tp[:, i * dil:i * dil + h, :, :]
        if hpad > h:
            s = jnp.pad(s, ((0, 0), (0, hpad - h), (0, 0), (0, 0)))
        shifts.append(s)
    return c, shifts


def conv3x3(pgroups, h, wim, w, b, *, dilation=1, negative_slope=0.1,
            out_dtype=DTYPE):
    """Stride-1 3x3 conv (padding == dilation) over a channel-group list.

    pgroups: list of (C_g, [3 row-shifted views]) whose channel concat is the
    logical conv input (the concat itself is never materialized in HBM).
    w: (Cout, sum(C_g), 3, 3) PyTorch layout, b: (Cout,).
    """
    bsz = pgroups[0][1][0].shape[0]
    hpad = pgroups[0][1][0].shape[1]
    th = _th_rows(h)
    assert hpad % th == 0
    cout = int(w.shape[0])
    cins = tuple(int(c) for c, _ in pgroups)
    offs = np.concatenate([[0], np.cumsum(cins)])

    args = []
    for _, shifts in pgroups:
        args.extend(shifts)
    for gi, cg in enumerate(cins):
        wg = w[:, int(offs[gi]):int(offs[gi + 1]), :, :]
        wg = jnp.transpose(wg, (2, 3, 1, 0)).reshape(9, cg, cout).astype(DTYPE)
        args.append(wg)
    args.append(b.reshape(1, cout).astype(jnp.float32))

    call = _conv3x3_call(bsz, hpad, th, wim, dilation, cins, cout,
                         negative_slope, out_dtype)
    out = call(*args)
    return out[:, :h, :, :]


def conv3x3_single(t, w, b, *, dilation=1, negative_slope=0.1,
                   out_dtype=DTYPE):
    bsz, h, wim, _ = t.shape
    th = _th_rows(h)
    hpad = pl.cdiv(h, th) * th
    pg = [_prep_group(t, hpad, dilation)]
    return conv3x3(pg, h, wim, w, b, dilation=dilation,
                   negative_slope=negative_slope, out_dtype=out_dtype)


# --------------------------------------------------------------------------
# im2col matmul kernel (only for the 6 stride-2 pyramid convs)
# --------------------------------------------------------------------------

def _mm_bias_act_kernel(a_ref, w_ref, b_ref, o_ref, *, ns):
    acc = jnp.dot(a_ref[...], w_ref[...], preferred_element_type=jnp.float32)
    acc = acc + b_ref[...]
    if ns is not None:
        acc = jnp.where(acc >= 0, acc, ns * acc)
    o_ref[...] = acc.astype(o_ref.dtype)


@functools.lru_cache(maxsize=None)
def _mm_call(m_pad, k, n_pad, tile_m, tile_n, ns, out_dtype):
    return pl.pallas_call(
        functools.partial(_mm_bias_act_kernel, ns=ns),
        grid=(m_pad // tile_m, n_pad // tile_n),
        in_specs=[pl.BlockSpec((tile_m, k), lambda i, j: (i, 0)),
                  pl.BlockSpec((k, tile_n), lambda i, j: (0, j)),
                  pl.BlockSpec((1, tile_n), lambda i, j: (0, j))],
        out_specs=pl.BlockSpec((tile_m, tile_n), lambda i, j: (i, j)),
        out_shape=jax.ShapeDtypeStruct((m_pad, n_pad), out_dtype),
        compiler_params=_cparams("parallel", "parallel"),
    )


def matmul_bias_act(a, w, b, *, negative_slope=None, out_dtype=DTYPE):
    """a: (M, K), w: (K, N), b: (N,) -> (M, N). bf16 MXU inputs, f32 accum."""
    m, k = a.shape
    n = w.shape[1]
    a = a.astype(DTYPE)
    w = w.astype(DTYPE)
    if n > 128:                              # lane-dense N tiling (conv6aa)
        n_pad, tile_n = _round_up(n, 128), 128
        w = jnp.pad(w, ((0, 0), (0, n_pad - n)))
        b = jnp.pad(b, (0, n_pad - n))
    else:
        n_pad = tile_n = n
    tile_m = min(512, _round_up(m, 8))       # pad M only to a multiple of 8
    if m > 16 and pl.cdiv(m, tile_m) < 2:    # >=2 M blocks for v7x megacore
        tile_m = _round_up(pl.cdiv(m, 2), 8)
    m_pad = _round_up(m, tile_m)
    if m_pad > m:
        a = jnp.pad(a, ((0, m_pad - m), (0, 0)))
    call = _mm_call(m_pad, k, n_pad, tile_m, tile_n, negative_slope, out_dtype)
    out = call(a, w, b.reshape(1, n_pad).astype(jnp.float32))
    return out[:m, :n]


def conv2d_s2(x, w, b, *, negative_slope=0.1, out_dtype=DTYPE):
    """3x3, stride-2, padding-1 conv via im2col + the Pallas matmul kernel."""
    bsz, h, win, cin = x.shape
    cout = w.shape[0]
    hout, wout = (h + 1) // 2, (win + 1) // 2
    xp = jnp.pad(x.astype(DTYPE), ((0, 0), (1, 1), (1, 1), (0, 0)))
    patches = []
    for i in range(3):
        for j in range(3):
            patches.append(xp[:, i:i + 2 * (hout - 1) + 1:2,
                                 j:j + 2 * (wout - 1) + 1:2, :])
    a = jnp.concatenate(patches, axis=-1).reshape(bsz * hout * wout, 9 * cin)
    wm = jnp.transpose(w, (2, 3, 1, 0)).reshape(9 * cin, cout)
    out = matmul_bias_act(a, wm, b, negative_slope=negative_slope,
                          out_dtype=out_dtype)
    return out.reshape(bsz, hout, wout, cout)


# --------------------------------------------------------------------------
# ConvTranspose2d(4, 2, 1) as one 3x3 sub-pixel conv (no zero-dilated input)
# --------------------------------------------------------------------------

def _deconv_as_conv3x3_weight(wt):
    """ConvTranspose2d(k=4,s=2,p=1) weight (Cin, Cout, 4, 4) -> equivalent
    sub-pixel weight (4*Cout, Cin, 3, 3): one stride-1 3x3 conv computes all
    four output parity phases at once."""
    ee = jnp.transpose(wt[:, :, ::-2, ::-2], (1, 0, 2, 3))    # (Cout,Cin,2,2)
    eo = jnp.transpose(wt[:, :, ::-2, 2::-2], (1, 0, 2, 3))
    oe = jnp.transpose(wt[:, :, 2::-2, ::-2], (1, 0, 2, 3))
    oo = jnp.transpose(wt[:, :, 2::-2, 2::-2], (1, 0, 2, 3))
    emb = lambda k, r, c: jnp.pad(k, ((0, 0), (0, 0), (r, 1 - r), (c, 1 - c)))
    return jnp.concatenate(
        [emb(ee, 0, 0), emb(eo, 0, 1), emb(oe, 1, 0), emb(oo, 1, 1)], axis=0)


def deconv4x4(pgroups, h, wim, wt, b, *, out_dtype=DTYPE):
    cout = int(wt.shape[1])
    wc = _deconv_as_conv3x3_weight(wt)
    bc = jnp.tile(b, 4)
    comb = conv3x3(pgroups, h, wim, wc, bc, dilation=1, negative_slope=None,
                   out_dtype=out_dtype)                    # (B, h, w, 4*Cout)
    bsz = comb.shape[0]
    comb = comb.reshape(bsz, h, wim, 2, 2, cout)
    return comb.transpose(0, 1, 3, 2, 4, 5).reshape(bsz, 2 * h, 2 * wim, cout)


def deconv4x4_single(t, wt, b, *, out_dtype=DTYPE):
    bsz, h, wim, _ = t.shape
    th = _th_rows(h)
    hpad = pl.cdiv(h, th) * th
    return deconv4x4([_prep_group(t, hpad, 1)], h, wim, wt, b,
                     out_dtype=out_dtype)


# --------------------------------------------------------------------------
# Correlation (cost volume) kernel, LeakyReLU fused
# --------------------------------------------------------------------------

def _corr_kernel(f_ref, s_ref, o_ref, *, th, wim, c, md):
    hi = pl.program_id(1)
    r0 = hi * th
    d = 2 * md + 1
    inv_c = 1.0 / c
    f = f_ref[0].astype(jnp.float32)                            # (th, wim, c)
    for dy in range(d):
        for dx in range(d):
            s = s_ref[0, pl.ds(r0 + dy, th), dx:dx + wim, :].astype(jnp.float32)
            v = jnp.sum(f * s, axis=-1) * inv_c                 # (th, wim)
            v = jnp.where(v >= 0, v, 0.1 * v)                   # fused LeakyReLU
            o_ref[0, dy * d + dx, :, :] = v.astype(o_ref.dtype)


@functools.lru_cache(maxsize=None)
def _corr_call(bsz, hpad, th, wim, c, md, out_dtype):
    d = 2 * md + 1
    return pl.pallas_call(
        functools.partial(_corr_kernel, th=th, wim=wim, c=c, md=md),
        grid=(bsz, hpad // th),
        in_specs=[
            pl.BlockSpec((1, th, wim, c), lambda bi, hi: (bi, hi, 0, 0)),
            pl.BlockSpec((1, hpad + 2 * md, wim + 2 * md, c),
                         lambda bi, hi: (bi, 0, 0, 0)),
        ],
        out_specs=pl.BlockSpec((1, d * d, th, wim), lambda bi, hi: (bi, 0, hi, 0)),
        out_shape=jax.ShapeDtypeStruct((bsz, d * d, hpad, wim), out_dtype),
        compiler_params=_cparams("parallel", "parallel"),
    )


def correlation(first, second, md=MD):
    """FunctionCorrelation: channel-mean of products over a (2*md+1)^2
    displacement window, with LeakyReLU(0.1) fused into the kernel.

    The md-padded `second` map stays VMEM-resident per batch element (a few
    MB at any PWC-Net pyramid level); displacements are computed in-kernel,
    so `second` is read ~once from HBM instead of 81x.
    # TODO(synk): for extremely large frames the per-batch resident `second`
    # tile would need an additional row-halo split.
    """
    b, h, w, c = first.shape
    th = 8 if h >= 8 else h                 # 8-aligned or full-H row tiles
    hpad = pl.cdiv(h, th) * th
    f = first.astype(DTYPE)
    if hpad > h:
        f = jnp.pad(f, ((0, 0), (0, hpad - h), (0, 0), (0, 0)))
    s = jnp.pad(second.astype(DTYPE),
                ((0, 0), (md, md + hpad - h), (md, md), (0, 0)))
    out = _corr_call(b, hpad, th, w, c, md, DTYPE)(f, s)    # (B, 81, hpad, W)
    out = out[:, :, :h, :]
    return jnp.transpose(out, (0, 2, 3, 1))                 # NHWC, 81 channels


# --------------------------------------------------------------------------
# Backward warp (bilinear grid_sample with PWC-Net validity mask)
# --------------------------------------------------------------------------

def warp(x, flo):
    """x: NHWC, flo: NHW2 ([...,0]=dx, [...,1]=dy)."""
    # TODO(synk): data-dependent bilinear gather kept in plain JAX (XLA gather);
    # no clean rectangular-tile Pallas equivalent.
    x = x.astype(jnp.float32)
    b, h, w, _ = x.shape
    gx = jnp.arange(w, dtype=jnp.float32)[None, None, :] + flo[..., 0]
    gy = jnp.arange(h, dtype=jnp.float32)[None, :, None] + flo[..., 1]
    x0 = jnp.floor(gx)
    y0 = jnp.floor(gy)
    x1 = x0 + 1.0
    y1 = y0 + 1.0
    wx1 = gx - x0
    wx0 = 1.0 - wx1
    wy1 = gy - y0
    wy0 = 1.0 - wy1
    bidx = jnp.arange(b)[:, None, None]

    def corner(yc, xc):
        valid = ((xc >= 0) & (xc <= w - 1) & (yc >= 0) & (yc <= h - 1))
        valid = valid.astype(jnp.float32)
        xi = jnp.clip(xc, 0, w - 1).astype(jnp.int32)
        yi = jnp.clip(yc, 0, h - 1).astype(jnp.int32)
        return x[bidx, yi, xi, :] * valid[..., None], valid

    v00, m00 = corner(y0, x0)
    v01, m01 = corner(y0, x1)
    v10, m10 = corner(y1, x0)
    v11, m11 = corner(y1, x1)
    out = ((wy0 * wx0)[..., None] * v00 + (wy0 * wx1)[..., None] * v01 +
           (wy1 * wx0)[..., None] * v10 + (wy1 * wx1)[..., None] * v11)
    mask = wy0 * wx0 * m00 + wy0 * wx1 * m01 + wy1 * wx0 * m10 + wy1 * wx1 * m11
    mask = jnp.where(mask < 0.9999, 0.0, 1.0)
    return out * mask[..., None]


# --------------------------------------------------------------------------
# Deterministic parameter initialization (shapes from PWCDCNet.__init__)
# --------------------------------------------------------------------------

def _init_conv(key, cin, cout, k=3):
    kw_, kb_ = jax.random.split(key)
    fan_in = cin * k * k
    w = jax.random.normal(kw_, (cout, cin, k, k), jnp.float32) / np.sqrt(fan_in)
    b = 0.01 * jax.random.normal(kb_, (cout,), jnp.float32)
    return w, b


def _init_deconv(key, cin, cout, k=4):
    kw_, kb_ = jax.random.split(key)
    fan_in = cin * k * k
    w = jax.random.normal(kw_, (cin, cout, k, k), jnp.float32) / np.sqrt(fan_in)
    b = 0.01 * jax.random.normal(kb_, (cout,), jnp.float32)
    return w, b


def init_params(seed=0):
    key = jax.random.PRNGKey(seed)
    params = {}

    def nk():
        nonlocal key
        key, sub = jax.random.split(key)
        return sub

    pyramid = [('conv1a', 3, 16), ('conv1aa', 16, 16), ('conv1b', 16, 16),
               ('conv2a', 16, 32), ('conv2aa', 32, 32), ('conv2b', 32, 32),
               ('conv3a', 32, 64), ('conv3aa', 64, 64), ('conv3b', 64, 64),
               ('conv4a', 64, 96), ('conv4aa', 96, 96), ('conv4b', 96, 96),
               ('conv5a', 96, 128), ('conv5aa', 128, 128), ('conv5b', 128, 128),
               ('conv6aa', 128, 196), ('conv6a', 196, 196), ('conv6b', 196, 196)]
    for name, ci, co in pyramid:
        params[name] = _init_conv(nk(), ci, co, 3)

    dd = list(np.cumsum([128, 128, 96, 64, 32]))   # [128, 256, 352, 416, 448]
    ods = {6: ND, 5: ND + 128 + 4, 4: ND + 96 + 4, 3: ND + 64 + 4, 2: ND + 32 + 4}
    outs = [128, 128, 96, 64, 32]
    for lvl, od in ods.items():
        cins = [od, od + dd[0], od + dd[1], od + dd[2], od + dd[3]]
        for i in range(5):
            params[f'conv{lvl}_{i}'] = _init_conv(nk(), cins[i], outs[i], 3)
        params[f'predict_flow{lvl}'] = _init_conv(nk(), od + dd[4], 2, 3)
        params[f'deconv{lvl}'] = _init_deconv(nk(), 2, 2, 4)
        if lvl != 2:
            params[f'upfeat{lvl}'] = _init_deconv(nk(), od + dd[4], 2, 4)

    dc = [('dc_conv1', ods[2] + dd[4], 128), ('dc_conv2', 128, 128),
          ('dc_conv3', 128, 128), ('dc_conv4', 128, 96), ('dc_conv5', 96, 64),
          ('dc_conv6', 64, 32), ('dc_conv7', 32, 2)]
    for name, ci, co in dc:
        params[name] = _init_conv(nk(), ci, co, 3)
    return params


# --------------------------------------------------------------------------
# Forward pass (mirrors PWCDCNet.forward)
# --------------------------------------------------------------------------

def pwcdcnet_forward(params, x):
    def cv_s2(name, t):
        w, b = params[name]
        return conv2d_s2(t, w, b)

    def cv(name, t, dilation=1, relu=True, out_dtype=DTYPE):
        w, b = params[name]
        return conv3x3_single(t, w, b, dilation=dilation,
                              negative_slope=0.1 if relu else None,
                              out_dtype=out_dtype)

    im1 = jnp.transpose(x[0], (0, 2, 3, 1))    # NCHW -> NHWC
    im2 = jnp.transpose(x[1], (0, 2, 3, 1))

    def pyramid(im):
        c1 = cv('conv1b', cv('conv1aa', cv_s2('conv1a', im)))
        c2 = cv('conv2b', cv('conv2aa', cv_s2('conv2a', c1)))
        c3 = cv('conv3b', cv('conv3aa', cv_s2('conv3a', c2)))
        c4 = cv('conv4b', cv('conv4aa', cv_s2('conv4a', c3)))
        c5 = cv('conv5b', cv('conv5aa', cv_s2('conv5a', c4)))
        c6 = cv('conv6b', cv('conv6a', cv_s2('conv6aa', c5)))
        return c1, c2, c3, c4, c5, c6

    c11, c12, c13, c14, c15, c16 = pyramid(im1)
    c21, c22, c23, c24, c25, c26 = pyramid(im2)

    def refine(lvl, base_tensors):
        """DenseNet block: the channel concatenations stay as a group list
        (never materialized in HBM); all 7 consumers (5 convs, predict_flow,
        upfeat) share each group's cached row-shifted views."""
        h, wim = base_tensors[0].shape[1], base_tensors[0].shape[2]
        th = _th_rows(h)
        hpad = pl.cdiv(h, th) * th
        pgroups = [_prep_group(t, hpad) for t in base_tensors]
        for i in range(5):
            w, b = params[f'conv{lvl}_{i}']
            o = conv3x3(pgroups, h, wim, w, b)
            pgroups = [_prep_group(o, hpad)] + pgroups   # cat((conv(x), x), 1)
        wf, bf = params[f'predict_flow{lvl}']
        flow = conv3x3(pgroups, h, wim, wf, bf, negative_slope=None,
                       out_dtype=jnp.float32)
        return pgroups, flow, h, wim

    # ----- level 6 -----
    corr6 = correlation(c16, c26)                       # LeakyReLU fused
    pg6, flow6, h6, w6 = refine(6, [corr6])
    up_flow6 = deconv4x4_single(flow6, *params['deconv6'], out_dtype=jnp.float32)
    up_feat6 = deconv4x4(pg6, h6, w6, *params['upfeat6'])

    # ----- level 5 -----
    warp5 = warp(c25, up_flow6 * 0.625)
    corr5 = correlation(c15, warp5)
    pg5, flow5, h5, w5 = refine(5, [corr5, c15, up_flow6, up_feat6])
    up_flow5 = deconv4x4_single(flow5, *params['deconv5'], out_dtype=jnp.float32)
    up_feat5 = deconv4x4(pg5, h5, w5, *params['upfeat5'])

    # ----- level 4 -----
    warp4 = warp(c24, up_flow5 * 1.25)
    corr4 = correlation(c14, warp4)
    pg4, flow4, h4, w4 = refine(4, [corr4, c14, up_flow5, up_feat5])
    up_flow4 = deconv4x4_single(flow4, *params['deconv4'], out_dtype=jnp.float32)
    up_feat4 = deconv4x4(pg4, h4, w4, *params['upfeat4'])

    # ----- level 3 -----
    warp3 = warp(c23, up_flow4 * 2.5)
    corr3 = correlation(c13, warp3)
    pg3, flow3, h3, w3 = refine(3, [corr3, c13, up_flow4, up_feat4])
    up_flow3 = deconv4x4_single(flow3, *params['deconv3'], out_dtype=jnp.float32)
    up_feat3 = deconv4x4(pg3, h3, w3, *params['upfeat3'])

    # ----- level 2 -----
    warp2 = warp(c22, up_flow3 * 5.0)
    corr2 = correlation(c12, warp2)
    pg2, flow2, h2, w2 = refine(2, [corr2, c12, up_flow3, up_feat3])

    # ----- context network (dilated convs) -----
    wdc, bdc = params['dc_conv1']
    y = conv3x3(pg2, h2, w2, wdc, bdc)                  # reuse level-2 groups
    y = cv('dc_conv2', y, dilation=2)
    y = cv('dc_conv3', y, dilation=4)
    y = cv('dc_conv4', y, dilation=8)
    y = cv('dc_conv5', y, dilation=16)
    y = cv('dc_conv6', y, dilation=1)
    y = cv('dc_conv7', y, relu=False, out_dtype=jnp.float32)
    flow2 = flow2 + y

    return jnp.transpose(flow2, (0, 3, 1, 2))           # NCHW: (B, 2, H/4, W/4)


# --------------------------------------------------------------------------

if __name__ == "__main__":
    B, H, W = 1, 64, 64          # spatial dims divisible by 64 (6 strides)
    key = jax.random.PRNGKey(0)
    k1, k2 = jax.random.split(key)
    im1 = jax.random.normal(k1, (B, 3, H, W), jnp.float32)
    im2 = jax.random.normal(k2, (B, 3, H, W), jnp.float32)
    x = jnp.stack([im1, im2], axis=0)        # (2, B, 3, H, W): x[0]=im1, x[1]=im2

    params = init_params(0)
    flow2 = pwcdcnet_forward(params, x)
    flow2 = jax.block_until_ready(flow2)

    assert flow2.shape == (B, 2, H // 4, W // 4), flow2.shape
    assert bool(jnp.all(jnp.isfinite(flow2)))
    print("KERNEL_OK")
</pallas_src>

<mosaic_0001>
module attributes {stable_mosaic.version = 11 : i64} {
  func.func @_mm_bias_act_kernel(%arg0: i32, %arg1: i32, %arg2: memref<512x27xbf16, #tpu.memory_space<vmem>>, %arg3: memref<27x16xbf16, #tpu.memory_space<vmem>>, %arg4: memref<1x16xf32, #tpu.memory_space<vmem>>, %arg5: memref<512x16xbf16, #tpu.memory_space<vmem>>) attributes {dimension_semantics = [#tpu.dimension_semantics<parallel>, #tpu.dimension_semantics<parallel>], iteration_bounds = array<i64: 2, 1>, scalar_prefetch = 0 : i64, scratch_operands = 0 : i64, tpu.core_type = #tpu.core_type<tc>, window_params = [{transform_indices = @transform_0, window_bounds = array<i64: 512, 27>}, {transform_indices = @transform_1, window_bounds = array<i64: 27, 16>}, {transform_indices = @transform_2, window_bounds = array<i64: 1, 16>}, {transform_indices = @transform_3, window_bounds = array<i64: 512, 16>}]} {
    %c0 = arith.constant 0 : index
    %c0_0 = arith.constant 0 : index
    %0 = vector.load %arg2[%c0, %c0_0] : memref<512x27xbf16, #tpu.memory_space<vmem>>, vector<512x27xbf16>
    %c0_1 = arith.constant 0 : index
    %c0_2 = arith.constant 0 : index
    %1 = vector.load %arg3[%c0_1, %c0_2] : memref<27x16xbf16, #tpu.memory_space<vmem>>, vector<27x16xbf16>
    %cst = arith.constant dense<0.000000e+00> : vector<512x16xf32>
    %2 = tpu.matmul %0, %1, %cst {dimension_numbers = #tpu.dot_dimension_numbers<[1], [0], [0], [1], [0, 0, 1, 1], [], []>} : vector<512x27xbf16>, vector<27x16xbf16>, vector<512x16xf32> -> vector<512x16xf32>
    %c0_3 = arith.constant 0 : index
    %c0_4 = arith.constant 0 : index
    %3 = vector.load %arg4[%c0_3, %c0_4] : memref<1x16xf32, #tpu.memory_space<vmem>>, vector<1x16xf32>
    %4 = vector.broadcast %3 : vector<1x16xf32> to vector<512x16xf32>
    %5 = arith.addf %2, %4 : vector<512x16xf32>
    %cst_5 = arith.constant 0.000000e+00 : f32
    %6 = vector.broadcast %cst_5 : f32 to vector<512x16xf32>
    %7 = arith.cmpf oge, %5, %6 : vector<512x16xf32>
    %cst_6 = arith.constant 1.000000e-01 : f32
    %8 = vector.broadcast %cst_6 : f32 to vector<512x16xf32>
    %9 = arith.mulf %8, %5 : vector<512x16xf32>
    %10 = arith.select %7, %5, %9 : vector<512x16xi1>, vector<512x16xf32>
    %11 = arith.truncf %10 : vector<512x16xf32> to vector<512x16xbf16>
    %c0_7 = arith.constant 0 : index
    %c0_8 = arith.constant 0 : index
    %12 = vector.load %arg5[%c0_7, %c0_8] : memref<512x16xbf16, #tpu.memory_space<vmem>>, vector<512x16xbf16>
    tpu.vector_store %arg5[%c0_7, %c0_8], %11 {strides = array<i32>} : memref<512x16xbf16, #tpu.memory_space<vmem>>, vector<512x16xbf16>,
    return
  }
  func.func @transform_0(%arg0: i32, %arg1: i32) -> (i32, i32) {
    %c0_i32 = arith.constant 0 : i32
    %c0_i32_0 = arith.constant 0 : i32
    return %arg0, %c0_i32 : i32, i32
  }
  func.func @transform_1(%arg0: i32, %arg1: i32) -> (i32, i32) {
    %c0_i32 = arith.constant 0 : i32
    %c0_i32_0 = arith.constant 0 : i32
    return %c0_i32, %arg1 : i32, i32
  }
  func.func @transform_2(%arg0: i32, %arg1: i32) -> (i32, i32) {
    %c0_i32 = arith.constant 0 : i32
    %c0_i32_0 = arith.constant 0 : i32
    return %c0_i32, %arg1 : i32, i32
  }
  func.func @transform_3(%arg0: i32, %arg1: i32) -> (i32, i32) {
    %c0_i32 = arith.constant 0 : i32
    return %arg0, %arg1 : i32, i32
  }
}

</mosaic_0001>

<llo_original>
// kernel: tpu_custom_call.1
$region0: #{tpu_custom_call.1}
  #allocation0 [shape = 'u32[]', space=smem, size = 0x4, offset = 0x4, fixed_abs, tag = 'smem constant byte address 0x4 - core index']
  #allocation1 [shape = 'u32[72,128]{1,0:T(1,128)}', space=vmem, size = 0x9000, scoped, tag = 'internal scratch']
  %s0 = inlined_call_operand.vmem [shape: bf16[1024,27], index: 0, kind: input, shape index: {}]
  %s1 = inlined_call_operand.vmem [shape: bf16[27,16], index: 1, kind: input, shape index: {}]
  %s2 = inlined_call_operand.vmem [shape: f32[1,16], index: 2, kind: input, shape index: {}]
  %s3 = inlined_call_operand.vmem [shape: bf16[1024,16], index: 3, kind: output, shape index: {}]
  %s4 = sld [smem:[#allocation0]]
  $region45: #{tpu_custom_call.1} parent=0
    _
  %s6 = ssub.s32 1, %s4
  %s7 = scalar_select 0, %s6, %s4
  loop: start=0, step=1, limit=4
  $region2: #{tpu_custom_call.1} parent=0 // loop_pre_header
    _
  $region3: #{tpu_custom_call.1} parent=0 // loop_header
    %s9 = sphi 0, %s13
    %p10 = scmp.ge.s32.totalorder %s9, 4
    %s16 = sphi 0, %s28
    %s17 = sphi 0, %s24
    %s18 = sphi 0, %s16
    %s19 = sphi 0, %s17
    %s20 = sphi 0, %s18
    %s21 = sphi 0, %s19
    %s31 = sphi 0, %s33
    %s34 = sphi 0, %s31
    %s35 = sphi 0, %s34
    %s51 = sphi 0, %s35
    %s57 = sphi 0, %s59
    %s60 = sphi 0, %s57
    %s61 = sphi 0, %s60
    %s77 = sphi 0, %s61
    %s83 = sphi 0, %s85
    %s86 = sphi 0, %s83
    %s87 = sphi 0, %s86
    %s103 = sphi 0, %s87
    %s111 = sphi 0, %s113
    %s114 = sphi 0, %s111
    %s115 = sphi 0, %s114
    %s131 = sphi 0, %s115
  $region4: #{tpu_custom_call.1} parent=0 // loop_header_branch
    %12 = sbr.rel (%p10) target = $region8
  $region5: #{tpu_custom_call.1} parent=0 // loop_body
    %s14 = ssub.s32 %s9, 1
    %s15 = ssub.s32 %s9, 2
    %s22 = sadd.s32 1, %s17
    %p23 = scmp.ge.s32.totalorder %s22, 1
    %s24 = scalar_select %p23, 0, %s22
    %s25 = sadd.s32 1, %s16
    %s26 = scalar_select %p23, %s25, %s16
    %p27 = scmp.ge.s32.totalorder %s26, 2
    %s28 = scalar_select %p27, 0, %s26
    %s29 = ssub.s32 %s16, %s28
    %p30 = scmp.eq.s32.totalorder %s29, 0
    %s32 = sadd.s32 %s31, 1
    %s33 = scalar_select %p30, %s31, %s32
    %p36 = pneg %p30
    %p37 = scmp.eq.s32.totalorder %s9, 1
    %p38 = por %p36, %p37
    %p39 = scmp.ne.s32.totalorder %s31, %s34
    %p40 = scmp.eq.s32.totalorder %s9, 0
    %p41 = por %p39, %p40
    %p42 = scmp.ne.s32.totalorder %s31, %s34
    %p43 = scmp.eq.s32.totalorder %s14, 1
    %p44 = por %p42, %p43
    %p45 = scmp.ne.s32.totalorder %s34, %s35
    %p46 = scmp.eq.s32.totalorder %s14, 0
    %p47 = por %p45, %p46
    %p48 = scmp.ne.s32.totalorder %s34, %s35
    %p49 = scmp.eq.s32.totalorder %s15, 1
    %p50 = por %p48, %p49
    %p52 = scmp.ne.s32.totalorder %s35, %s51
    %p53 = scmp.eq.s32.totalorder %s15, 0
    %p54 = por %p52, %p53
    %s55 = ssub.s32 %s17, %s24
    %p56 = scmp.eq.s32.totalorder %s55, 0
    %s58 = sadd.s32 %s57, 1
    %s59 = scalar_select %p56, %s57, %s58
    %p62 = pneg %p56
    %p63 = scmp.eq.s32.totalorder %s9, 1
    %p64 = por %p62, %p63
    %p65 = scmp.ne.s32.totalorder %s57, %s60
    %p66 = scmp.eq.s32.totalorder %s9, 0
    %p67 = por %p65, %p66
    %p68 = scmp.ne.s32.totalorder %s57, %s60
    %p69 = scmp.eq.s32.totalorder %s14, 1
    %p70 = por %p68, %p69
    %p71 = scmp.ne.s32.totalorder %s60, %s61
    %p72 = scmp.eq.s32.totalorder %s14, 0
    %p73 = por %p71, %p72
    %p74 = scmp.ne.s32.totalorder %s60, %s61
    %p75 = scmp.eq.s32.totalorder %s15, 1
    %p76 = por %p74, %p75
    %p78 = scmp.ne.s32.totalorder %s61, %s77
    %p79 = scmp.eq.s32.totalorder %s15, 0
    %p80 = por %p78, %p79
    %s81 = ssub.s32 %s17, %s24
    %p82 = scmp.eq.s32.totalorder %s81, 0
    %s84 = sadd.s32 %s83, 1
    %s85 = scalar_select %p82, %s83, %s84
    %p88 = pneg %p82
    %p89 = scmp.eq.s32.totalorder %s9, 1
    %p90 = por %p88, %p89
    %p91 = scmp.ne.s32.totalorder %s83, %s86
    %p92 = scmp.eq.s32.totalorder %s9, 0
    %p93 = por %p91, %p92
    %p94 = scmp.ne.s32.totalorder %s83, %s86
    %p95 = scmp.eq.s32.totalorder %s14, 1
    %p96 = por %p94, %p95
    %p97 = scmp.ne.s32.totalorder %s86, %s87
    %p98 = scmp.eq.s32.totalorder %s14, 0
    %p99 = por %p97, %p98
    %p100 = scmp.ne.s32.totalorder %s86, %s87
    %p101 = scmp.eq.s32.totalorder %s15, 1
    %p102 = por %p100, %p101
    %p104 = scmp.ne.s32.totalorder %s87, %s103
    %p105 = scmp.eq.s32.totalorder %s15, 0
    %p106 = por %p104, %p105
    %s107 = ssub.s32 %s16, %s28
    %s108 = ssub.s32 %s17, %s24
    %s109 = sor.u32 %s107, %s108
    %p110 = scmp.eq.s32.totalorder %s109, 0
    %s112 = sadd.s32 %s111, 1
    %s113 = scalar_select %p110, %s111, %s112
    %p116 = pneg %p110
    %p117 = scmp.eq.s32.totalorder %s9, 1
    %p118 = por %p116, %p117
    %p119 = scmp.ne.s32.totalorder %s111, %s114
    %p120 = scmp.eq.s32.totalorder %s9, 0
    %p121 = por %p119, %p120
    %p122 = scmp.ne.s32.totalorder %s111, %s114
    %p123 = scmp.eq.s32.totalorder %s14, 1
    %p124 = por %p122, %p123
    %p125 = scmp.ne.s32.totalorder %s114, %s115
    %p126 = scmp.eq.s32.totalorder %s14, 0
    %p127 = por %p125, %p126
    %p128 = scmp.ne.s32.totalorder %s114, %s115
    %p129 = scmp.eq.s32.totalorder %s15, 1
    %p130 = por %p128, %p129
    %p132 = scmp.ne.s32.totalorder %s115, %s131
    %p133 = scmp.eq.s32.totalorder %s15, 0
    %p134 = por %p132, %p133
    %p135 = scmp.le.s32.totalorder 1, %s9
    %p136 = scmp.lt.s32.totalorder %s9, 3
    %p137 = pnand %p135, %p136
    %p138 = pneg %p137
    // Predicated region
    $region9: #{tpu_custom_call.1} parent=5 // pred_check
      _
    $region10: #{tpu_custom_call.1} parent=5 // pred_check_branch
      %140 = sbr.rel (%p137) target = $region12
    $region11: #{tpu_custom_call.1} parent=5 // pred_region
      %s141 = ssub.s32 %s9, 1
      // Predicated region
      $region13: #{tpu_custom_call.1} parent=11 // pred_check
        %p142 = pneg %p73
      $region14: #{tpu_custom_call.1} parent=11 // pred_check_branch
        %144 = sbr.rel (%p142) target = $region16
      $region15: #{tpu_custom_call.1} parent=11 // pred_region
        %p145 = scmp.lt.s32.totalorder %s19, 0
        %s146 = scalar_select %p145, %s19, 0
        %s147 = smul.addr %s146, 4
        %s148 = scalar_lea.vmem %s1, %s147
      $region16: #{tpu_custom_call.1} parent=11 // pred_fallthru
        _
      // Predicated region
      $region17: #{tpu_custom_call.1} parent=11 // pred_check
        %p149 = pneg %p99
      $region18: #{tpu_custom_call.1} parent=11 // pred_check_branch
        %151 = sbr.rel (%p149) target = $region20
      $region19: #{tpu_custom_call.1} parent=11 // pred_region
        %p152 = scmp.lt.s32.totalorder %s19, 0
        %s153 = scalar_select %p152, %s19, 0
        %s154 = scalar_lea.vmem %s2, %s153
      $region20: #{tpu_custom_call.1} parent=11 // pred_fallthru
        _
    $region12: #{tpu_custom_call.1} parent=5 // pred_fallthru
      _
    %p155 = scmp.lt.s32.totalorder %s9, 2
    // Predicated region
    $region21: #{tpu_custom_call.1} parent=5 // pred_check
      %p156 = pneg %p155
    $region22: #{tpu_custom_call.1} parent=5 // pred_check_branch
      %158 = sbr.rel (%p156) target = $region24
    $region23: #{tpu_custom_call.1} parent=5 // pred_region
      // Predicated region
      $region25: #{tpu_custom_call.1} parent=23 // pred_check
        %p159 = pneg %p41
      $region26: #{tpu_custom_call.1} parent=23 // pred_check_branch
        %161 = sbr.rel (%p159) target = $region28
      $region27: #{tpu_custom_call.1} parent=23 // pred_region
        %s162 = smul.u32 64, %s16
        %p163 = scmp.lt.s32.totalorder %s162, 127
        %s164 = scalar_select %p163, %s162, 127
        %s165 = smul.addr %s164, 4
        %s166 = scalar_lea.vmem %s0, %s165
        %s167 = smul.u32 64, %s16
      $region28: #{tpu_custom_call.1} parent=23 // pred_fallthru
        _
    $region24: #{tpu_custom_call.1} parent=5 // pred_fallthru
      _
    %p168 = scmp.le.s32.totalorder 1, %s9
    %p169 = scmp.lt.s32.totalorder %s9, 3
    %p170 = pnand %p168, %p169
    %p171 = pneg %p170
    // Predicated region
    $region29: #{tpu_custom_call.1} parent=5 // pred_check
      _
    $region30: #{tpu_custom_call.1} parent=5 // pred_check_branch
      %173 = sbr.rel (%p170) target = $region32
    $region31: #{tpu_custom_call.1} parent=5 // pred_region
      %s174 = ssub.s32 %s9, 1
      %s175 = smul.u32 64, %s18
      %p176 = scmp.lt.s32.totalorder %s175, 127
      %s177 = scalar_select %p176, %s175, 127
      %s178 = smul.addr %s177, 4
      %s179 = scalar_lea.vmem %s0, %s178
      %p180 = pneg %p47
      %p181 = pneg %p44
      %p182 = scmp.lt.s32.totalorder %s19, 0
      %s183 = scalar_select %p182, %s19, 0
      %s184 = smul.addr %s183, 4
      %s185 = scalar_lea.vmem %s1, %s184
      %p186 = pneg %p73
      %p187 = pneg %p70
      %p188 = scmp.lt.s32.totalorder %s19, 0
      %s189 = scalar_select %p188, %s19, 0
      %s190 = scalar_lea.vmem %s2, %s189
      %p191 = pneg %p99
      %p192 = pneg %p96
      %p193 = pneg %p127
      %p194 = pneg %p124
      %s195 = smul.u32 64, %s18
      %p196 = scmp.lt.s32.totalorder %s195, 127
      %s197 = scalar_select %p196, %s195, 127
      %p198 = scmp.lt.s32.totalorder %s19, 0
      %s199 = scalar_select %p198, %s19, 0
      %s200 = sadd.s32 %s199, %s197
      %s201 = smul.addr %s200, 4
      %s202 = scalar_lea.vmem %s3, %s201
      %s203 = smul.u32 64, %s18
      %p204 = scmp.lt.s32.totalorder %s203, 127
      %s205 = scalar_select %p204, %s203, 127
      %s206 = smul.addr %s205, 4
      %s207 = scalar_lea.vmem %s0, %s206
      %s208 = smul.u32 64, %s18
      %p209 = scmp.lt.s32.totalorder %s19, 0
      %s210 = scalar_select %p209, %s19, 0
      %s211 = smul.addr %s210, 4
      %s212 = scalar_lea.vmem %s1, %s211
      %p213 = scmp.lt.s32.totalorder %s19, 0
      %s214 = scalar_select %p213, %s19, 0
      %s215 = scalar_lea.vmem %s2, %s214
      %s216 = smul.u32 64, %s18
      %p217 = scmp.lt.s32.totalorder %s216, 127
      %s218 = scalar_select %p217, %s216, 127
      %p219 = scmp.lt.s32.totalorder %s19, 0
      %s220 = scalar_select %p219, %s19, 0
      %s221 = sadd.s32 %s220, %s218
      %s222 = smul.addr %s221, 4
      %s223 = scalar_lea.vmem %s3, %s222
      %s224 = smul.u32 64, %s18
      %v226 = vld [vmem:[%s207] sm:$0xf]
      %v227 = vld [vmem:[%s207 + $0x4] sm:$0xf]
      %v228 = vld [vmem:[%s207 + $0x8] sm:$0xf]
      %v229 = vld [vmem:[%s207 + $0xc] sm:$0xf]
      %v230 = vld [vmem:[%s207 + $0x10] sm:$0xf]
      %v231 = vld [vmem:[%s207 + $0x14] sm:$0xf]
      %v232 = vld [vmem:[%s207 + $0x18] sm:$0xf]
      %v233 = vld [vmem:[%s207 + $0x1c] sm:$0xf]
      %v234 = vld [vmem:[%s207 + $0x20] sm:$0xf]
      %v235 = vld [vmem:[%s207 + $0x24] sm:$0xf]
      %v236 = vld [vmem:[%s207 + $0x28] sm:$0xf]
      %v237 = vld [vmem:[%s207 + $0x2c] sm:$0xf]
      %v238 = vld [vmem:[%s207 + $0x30] sm:$0xf]
      %v239 = vld [vmem:[%s207 + $0x34] sm:$0xf]
      %v240 = vld [vmem:[%s207 + $0x38] sm:$0xf]
      %v241 = vld [vmem:[%s207 + $0x3c] sm:$0xf]
      %v242 = vld [vmem:[%s207 + $0x40] sm:$0xf]
      %v243 = vld [vmem:[%s207 + $0x44] sm:$0xf]
      %v244 = vld [vmem:[%s207 + $0x48] sm:$0xf]
      %v245 = vld [vmem:[%s207 + $0x4c] sm:$0xf]
      %v246 = vld [vmem:[%s207 + $0x50] sm:$0xf]
      %v247 = vld [vmem:[%s207 + $0x54] sm:$0xf]
      %v248 = vld [vmem:[%s207 + $0x58] sm:$0xf]
      %v249 = vld [vmem:[%s207 + $0x5c] sm:$0xf]
      %v250 = vld [vmem:[%s207 + $0x60] sm:$0xf]
      %v251 = vld [vmem:[%s207 + $0x64] sm:$0xf]
      %v252 = vld [vmem:[%s207 + $0x68] sm:$0xf]
      %v253 = vld [vmem:[%s207 + $0x6c] sm:$0xf]
      %v254 = vld [vmem:[%s207 + $0x70] sm:$0xf]
      %v255 = vld [vmem:[%s207 + $0x74] sm:$0xf]
      %v256 = vld [vmem:[%s207 + $0x78] sm:$0xf]
      %v257 = vld [vmem:[%s207 + $0x7c] sm:$0xf]
      %v258 = vld [vmem:[%s207 + $0x80] sm:$0xf]
      %v259 = vld [vmem:[%s207 + $0x84] sm:$0xf]
      %v260 = vld [vmem:[%s207 + $0x88] sm:$0xf]
      %v261 = vld [vmem:[%s207 + $0x8c] sm:$0xf]
      %v262 = vld [vmem:[%s207 + $0x90] sm:$0xf]
      %v263 = vld [vmem:[%s207 + $0x94] sm:$0xf]
      %v264 = vld [vmem:[%s207 + $0x98] sm:$0xf]
      %v265 = vld [vmem:[%s207 + $0x9c] sm:$0xf]
      %v266 = vld [vmem:[%s207 + $0xa0] sm:$0xf]
      %v267 = vld [vmem:[%s207 + $0xa4] sm:$0xf]
      %v268 = vld [vmem:[%s207 + $0xa8] sm:$0xf]
      %v269 = vld [vmem:[%s207 + $0xac] sm:$0xf]
      %v270 = vld [vmem:[%s207 + $0xb0] sm:$0xf]
      %v271 = vld [vmem:[%s207 + $0xb4] sm:$0xf]
      %v272 = vld [vmem:[%s207 + $0xb8] sm:$0xf]
      %v273 = vld [vmem:[%s207 + $0xbc] sm:$0xf]
      %v274 = vld [vmem:[%s207 + $0xc0] sm:$0xf]
      %v275 = vld [vmem:[%s207 + $0xc4] sm:$0xf]
      %v276 = vld [vmem:[%s207 + $0xc8] sm:$0xf]
      %v277 = vld [vmem:[%s207 + $0xcc] sm:$0xf]
      %v278 = vld [vmem:[%s207 + $0xd0] sm:$0xf]
      %v279 = vld [vmem:[%s207 + $0xd4] sm:$0xf]
      %v280 = vld [vmem:[%s207 + $0xd8] sm:$0xf]
      %v281 = vld [vmem:[%s207 + $0xdc] sm:$0xf]
      %v282 = vld [vmem:[%s207 + $0xe0] sm:$0xf]
      %v283 = vld [vmem:[%s207 + $0xe4] sm:$0xf]
      %v284 = vld [vmem:[%s207 + $0xe8] sm:$0xf]
      %v285 = vld [vmem:[%s207 + $0xec] sm:$0xf]
      %v286 = vld [vmem:[%s207 + $0xf0] sm:$0xf]
      %v287 = vld [vmem:[%s207 + $0xf4] sm:$0xf]
      %v288 = vld [vmem:[%s207 + $0xf8] sm:$0xf]
      %v289 = vld [vmem:[%s207 + $0xfc] sm:$0xf]
      %v290 = vld [vmem:[%s212] sm:$0xf]
      %v291 = vld [vmem:[%s212 + $0x4] sm:$0xf]
      %v292 = vld [vmem:[%s212 + $0x8] sm:$0xf]
      %v293 = vld [vmem:[%s212 + $0xc] sm:$0x3]
      %v294 = vld [vmem:[%s215] sm:$0x1]
      %v296 = vperm.slane %v294, 0
      %v362 = vunpack.c.l.b16 %v226
      %v363 = vunpack.c.l.b16 %v227
      %v364 = vunpack.c.l.b16 %v228
      %v365 = vunpack.c.l.b16 %v229
      %v366 = vunpack.c.l.b16 %v230
      %v367 = vunpack.c.l.b16 %v231
      %v368 = vunpack.c.l.b16 %v232
      %v369 = vunpack.c.l.b16 %v233
      %v370 = vunpack.c.l.b16 %v234
      %v371 = vunpack.c.l.b16 %v235
      %v372 = vunpack.c.l.b16 %v236
      %v373 = vunpack.c.l.b16 %v237
      %v374 = vunpack.c.l.b16 %v238
      %v375 = vunpack.c.l.b16 %v239
      %v376 = vunpack.c.l.b16 %v240
      %v377 = vunpack.c.l.b16 %v241
      %v378 = vunpack.c.l.b16 %v242
      %v379 = vunpack.c.l.b16 %v243
      %v380 = vunpack.c.l.b16 %v244
      %v381 = vunpack.c.l.b16 %v245
      %v382 = vunpack.c.l.b16 %v246
      %v383 = vunpack.c.l.b16 %v247
      %v384 = vunpack.c.l.b16 %v248
      %v385 = vunpack.c.l.b16 %v249
      %v386 = vunpack.c.l.b16 %v250
      %v387 = vunpack.c.l.b16 %v251
      %v388 = vunpack.c.l.b16 %v252
      %v389 = vunpack.c.l.b16 %v253
      %v390 = vunpack.c.l.b16 %v254
      %v391 = vunpack.c.l.b16 %v255
      %v392 = vunpack.c.l.b16 %v256
      %v393 = vunpack.c.l.b16 %v257
      %v394 = vunpack.c.l.b16 %v258
      %v395 = vunpack.c.l.b16 %v259
      %v396 = vunpack.c.l.b16 %v260
      %v397 = vunpack.c.l.b16 %v261
      %v398 = vunpack.c.l.b16 %v262
      %v399 = vunpack.c.l.b16 %v263
      %v400 = vunpack.c.l.b16 %v264
      %v401 = vunpack.c.l.b16 %v265
      %v402 = vunpack.c.l.b16 %v266
      %v403 = vunpack.c.l.b16 %v267
      %v404 = vunpack.c.l.b16 %v268
      %v405 = vunpack.c.l.b16 %v269
      %v406 = vunpack.c.l.b16 %v270
      %v407 = vunpack.c.l.b16 %v271
      %v408 = vunpack.c.l.b16 %v272
      %v409 = vunpack.c.l.b16 %v273
      %v410 = vunpack.c.l.b16 %v274
      %v411 = vunpack.c.l.b16 %v275
      %v412 = vunpack.c.l.b16 %v276
      %v413 = vunpack.c.l.b16 %v277
      %v414 = vunpack.c.l.b16 %v278
      %v415 = vunpack.c.l.b16 %v279
      %v416 = vunpack.c.l.b16 %v280
      %v417 = vunpack.c.l.b16 %v281
      %v418 = vunpack.c.l.b16 %v282
      %v419 = vunpack.c.l.b16 %v283
      %v420 = vunpack.c.l.b16 %v284
      %v421 = vunpack.c.l.b16 %v285
      %v422 = vunpack.c.l.b16 %v286
      %v423 = vunpack.c.l.b16 %v287
      %v424 = vunpack.c.l.b16 %v288
      %v425 = vunpack.c.l.b16 %v289
      %v426 = vpack.c.b16 %v363, %v362
      %v427 = vpack.c.b16 %v365, %v364
      %v428 = vpack.c.b16 %v367, %v366
      %v429 = vpack.c.b16 %v369, %v368
      %v430 = vpack.c.b16 %v371, %v370
      %v431 = vpack.c.b16 %v373, %v372
      %v432 = vpack.c.b16 %v375, %v374
      %v433 = vpack.c.b16 %v377, %v376
      %v434 = vpack.c.b16 %v379, %v378
      %v435 = vpack.c.b16 %v381, %v380
      %v436 = vpack.c.b16 %v383, %v382
      %v437 = vpack.c.b16 %v385, %v384
      %v438 = vpack.c.b16 %v387, %v386
      %v439 = vpack.c.b16 %v389, %v388
      %v440 = vpack.c.b16 %v391, %v390
      %v441 = vpack.c.b16 %v393, %v392
      %v442 = vpack.c.b16 %v395, %v394
      %v443 = vpack.c.b16 %v397, %v396
      %v444 = vpack.c.b16 %v399, %v398
      %v445 = vpack.c.b16 %v401, %v400
      %v446 = vpack.c.b16 %v403, %v402
      %v447 = vpack.c.b16 %v405, %v404
      %v448 = vpack.c.b16 %v407, %v406
      %v449 = vpack.c.b16 %v409, %v408
      %v450 = vpack.c.b16 %v411, %v410
      %v451 = vpack.c.b16 %v413, %v412
      %v452 = vpack.c.b16 %v415, %v414
      %v453 = vpack.c.b16 %v417, %v416
      %v454 = vpack.c.b16 %v419, %v418
      %v455 = vpack.c.b16 %v421, %v420
      %v456 = vpack.c.b16 %v423, %v422
      %v457 = vpack.c.b16 %v425, %v424
      %v462 = vunpack.c.l.b16 %v290
      %v463 = vunpack.c.l.b16 %v291
      %v464 = vunpack.c.l.b16 %v292
      %v465 = vunpack.c.l.b16 %v293
      %v466 = vpack.c.b16 %v463, %v462
      %v467 = vpack.c.b16 %v465, %v464
      %vm469 = vcmask 220160
      %v471 = vsel %vm469, %v426, 0
      %v474 = vsel %vm469, %v427, 0
      %v477 = vsel %vm469, %v428, 0
      %v480 = vsel %vm469, %v429, 0
      %v483 = vsel %vm469, %v430, 0
      %v486 = vsel %vm469, %v431, 0
      %v489 = vsel %vm469, %v432, 0
      %v492 = vsel %vm469, %v433, 0
      %v495 = vsel %vm469, %v434, 0
      %v498 = vsel %vm469, %v435, 0
      %v501 = vsel %vm469, %v436, 0
      %v504 = vsel %vm469, %v437, 0
      %v507 = vsel %vm469, %v438, 0
      %v510 = vsel %vm469, %v439, 0
      %v513 = vsel %vm469, %v440, 0
      %v516 = vsel %vm469, %v441, 0
      %v519 = vsel %vm469, %v442, 0
      %v522 = vsel %vm469, %v443, 0
      %v525 = vsel %vm469, %v444, 0
      %v528 = vsel %vm469, %v445, 0
      %v531 = vsel %vm469, %v446, 0
      %v534 = vsel %vm469, %v447, 0
      %v537 = vsel %vm469, %v448, 0
      %v540 = vsel %vm469, %v449, 0
      %v543 = vsel %vm469, %v450, 0
      %v546 = vsel %vm469, %v451, 0
      %v549 = vsel %vm469, %v452, 0
      %v552 = vsel %vm469, %v453, 0
      %v555 = vsel %vm469, %v454, 0
      %v558 = vsel %vm469, %v455, 0
      %v561 = vsel %vm469, %v456, 0
      %v564 = vsel %vm469, %v457, 0
      %vm566 = vcmask 1044480
      %vm567 = vcmask 1045504
      %v568 = vsel %vm566, 4294967295, 65535
      %v569 = vsel %vm567, %v568, 0
      %v571 = vand.u32 %v467, %v569
      %573 = vmatpush.bf16.msra.mxu0 0
      %574 = vmatpush.bf16.msra.mxu0 0
      %575 = vmatpush.bf16.msra.mxu0 0
      %576 = vmatpush.bf16.msra.mxu0 0
      %577 = vmatpush.bf16.msra.mxu0 0
      %578 = vmatpush.bf16.msra.mxu0 0
      %579 = vmatpush.bf16.msra.mxu0 %v571
      %580 = vmatpush.bf16.msra.mxu0 %v466
      %581 = vmatmul.bf16.gmra.mxu0 %v471
      %v582 = vpop.f32.mrf.mxu0
      %v583 = vadd.f32 %v296, %v582
      %v584 = vpop.f32.mrf.mxu0
      %v585 = vadd.f32 %v296, %v584
      %586 = vmatmul.bf16.gmra.mxu0 %v474
      %v587 = vpop.f32.mrf.mxu0
      %v588 = vadd.f32 %v296, %v587
      %v589 = vpop.f32.mrf.mxu0
      %v590 = vadd.f32 %v296, %v589
      %591 = vmatmul.bf16.gmra.mxu0 %v477
      %v592 = vpop.f32.mrf.mxu0
      %v593 = vadd.f32 %v296, %v592
      %v594 = vpop.f32.mrf.mxu0
      %v595 = vadd.f32 %v296, %v594
      %596 = vmatmul.bf16.gmra.mxu0 %v480
      %v597 = vpop.f32.mrf.mxu0
      %v598 = vadd.f32 %v296, %v597
      %v599 = vpop.f32.mrf.mxu0
      %v600 = vadd.f32 %v296, %v599
      %601 = vmatmul.bf16.gmra.mxu0 %v483
      %v602 = vpop.f32.mrf.mxu0
      %v603 = vadd.f32 %v296, %v602
      %v604 = vpop.f32.mrf.mxu0
      %v605 = vadd.f32 %v296, %v604
      %606 = vmatmul.bf16.gmra.mxu0 %v486
      %v607 = vpop.f32.mrf.mxu0
      %v608 = vadd.f32 %v296, %v607
      %v609 = vpop.f32.mrf.mxu0
      %v610 = vadd.f32 %v296, %v609
      %611 = vmatmul.bf16.gmra.mxu0 %v489
      %v612 = vpop.f32.mrf.mxu0
      %v613 = vadd.f32 %v296, %v612
      %v614 = vpop.f32.mrf.mxu0
      %v615 = vadd.f32 %v296, %v614
      %616 = vmatmul.bf16.gmra.mxu0 %v492
      %v617 = vpop.f32.mrf.mxu0
      %v618 = vadd.f32 %v296, %v617
      %v619 = vpop.f32.mrf.mxu0
      %v620 = vadd.f32 %v296, %v619
      %621 = vmatmul.bf16.gmra.mxu0 %v495
      %v622 = vpop.f32.mrf.mxu0
      %v623 = vadd.f32 %v296, %v622
      %v624 = vpop.f32.mrf.mxu0
      %v625 = vadd.f32 %v296, %v624
      %626 = vmatmul.bf16.gmra.mxu0 %v498
      %v627 = vpop.f32.mrf.mxu0
      %v628 = vadd.f32 %v296, %v627
      %v629 = vpop.f32.mrf.mxu0
      %v630 = vadd.f32 %v296, %v629
      %631 = vmatmul.bf16.gmra.mxu0 %v501
      %v632 = vpop.f32.mrf.mxu0
      %v633 = vadd.f32 %v296, %v632
      %v634 = vpop.f32.mrf.mxu0
      %v635 = vadd.f32 %v296, %v634
      %636 = vmatmul.bf16.gmra.mxu0 %v504
      %v637 = vpop.f32.mrf.mxu0
      %v638 = vadd.f32 %v296, %v637
      %v639 = vpop.f32.mrf.mxu0
      %v640 = vadd.f32 %v296, %v639
      %641 = vmatmul.bf16.gmra.mxu0 %v507
      %v642 = vpop.f32.mrf.mxu0
      %v643 = vadd.f32 %v296, %v642
      %v644 = vpop.f32.mrf.mxu0
      %v645 = vadd.f32 %v296, %v644
      %646 = vmatmul.bf16.gmra.mxu0 %v510
      %v647 = vpop.f32.mrf.mxu0
      %v648 = vadd.f32 %v296, %v647
      %v649 = vpop.f32.mrf.mxu0
      %v650 = vadd.f32 %v296, %v649
      %651 = vmatmul.bf16.gmra.mxu0 %v513
      %v652 = vpop.f32.mrf.mxu0
      %v653 = vadd.f32 %v296, %v652
      %v654 = vpop.f32.mrf.mxu0
      %v655 = vadd.f32 %v296, %v654
      %656 = vmatmul.bf16.gmra.mxu0 %v516
      %v657 = vpop.f32.mrf.mxu0
      %v658 = vadd.f32 %v296, %v657
      %v659 = vpop.f32.mrf.mxu0
      %v660 = vadd.f32 %v296, %v659
      %661 = vmatmul.bf16.gmra.mxu0 %v519
      %v662 = vpop.f32.mrf.mxu0
      %v663 = vadd.f32 %v296, %v662
      %v664 = vpop.f32.mrf.mxu0
      %v665 = vadd.f32 %v296, %v664
      %666 = vmatmul.bf16.gmra.mxu0 %v522
      %v667 = vpop.f32.mrf.mxu0
      %v668 = vadd.f32 %v296, %v667
      %v669 = vpop.f32.mrf.mxu0
      %v670 = vadd.f32 %v296, %v669
      %671 = vmatmul.bf16.gmra.mxu0 %v525
      %v672 = vpop.f32.mrf.mxu0
      %v673 = vadd.f32 %v296, %v672
      %v674 = vpop.f32.mrf.mxu0
      %v675 = vadd.f32 %v296, %v674
      %676 = vmatmul.bf16.gmra.mxu0 %v528
      %v677 = vpop.f32.mrf.mxu0
      %v678 = vadd.f32 %v296, %v677
      %v679 = vpop.f32.mrf.mxu0
      %v680 = vadd.f32 %v296, %v679
      %681 = vmatmul.bf16.gmra.mxu0 %v531
      %v682 = vpop.f32.mrf.mxu0
      %v683 = vadd.f32 %v296, %v682
      %v684 = vpop.f32.mrf.mxu0
      %v685 = vadd.f32 %v296, %v684
      %686 = vmatmul.bf16.gmra.mxu0 %v534
      %v687 = vpop.f32.mrf.mxu0
      %v688 = vadd.f32 %v296, %v687
      %v689 = vpop.f32.mrf.mxu0
      %v690 = vadd.f32 %v296, %v689
      %691 = vmatmul.bf16.gmra.mxu0 %v537
      %v692 = vpop.f32.mrf.mxu0
      %v693 = vadd.f32 %v296, %v692
      %v694 = vpop.f32.mrf.mxu0
      %v695 = vadd.f32 %v296, %v694
      %696 = vmatmul.bf16.gmra.mxu0 %v540
      %v697 = vpop.f32.mrf.mxu0
      %v698 = vadd.f32 %v296, %v697
      %v699 = vpop.f32.mrf.mxu0
      %v700 = vadd.f32 %v296, %v699
      %701 = vmatmul.bf16.gmra.mxu0 %v543
      %v702 = vpop.f32.mrf.mxu0
      %v703 = vadd.f32 %v296, %v702
      %v704 = vpop.f32.mrf.mxu0
      %v705 = vadd.f32 %v296, %v704
      %706 = vmatmul.bf16.gmra.mxu0 %v546
      %v707 = vpop.f32.mrf.mxu0
      %v708 = vadd.f32 %v296, %v707
      %v709 = vpop.f32.mrf.mxu0
      %v710 = vadd.f32 %v296, %v709
      %711 = vmatmul.bf16.gmra.mxu0 %v549
      %v712 = vpop.f32.mrf.mxu0
      %v713 = vadd.f32 %v296, %v712
      %v714 = vpop.f32.mrf.mxu0
      %v715 = vadd.f32 %v296, %v714
      %716 = vmatmul.bf16.gmra.mxu0 %v552
      %v717 = vpop.f32.mrf.mxu0
      %v718 = vadd.f32 %v296, %v717
      %v719 = vpop.f32.mrf.mxu0
      %v720 = vadd.f32 %v296, %v719
      %721 = vmatmul.bf16.gmra.mxu0 %v555
      %v722 = vpop.f32.mrf.mxu0
      %v723 = vadd.f32 %v296, %v722
      %v724 = vpop.f32.mrf.mxu0
      %v725 = vadd.f32 %v296, %v724
      %726 = vmatmul.bf16.gmra.mxu0 %v558
      %v727 = vpop.f32.mrf.mxu0
      %v728 = vadd.f32 %v296, %v727
      %v729 = vpop.f32.mrf.mxu0
      %v730 = vadd.f32 %v296, %v729
      %731 = vmatmul.bf16.gmra.mxu0 %v561
      %v732 = vpop.f32.mrf.mxu0
      %v733 = vadd.f32 %v296, %v732
      %v734 = vpop.f32.mrf.mxu0
      %v735 = vadd.f32 %v296, %v734
      %736 = vmatmul.bf16.gmra.mxu0 %v564
      %v737 = vpop.f32.mrf.mxu0
      %v738 = vadd.f32 %v296, %v737
      %v739 = vpop.f32.mrf.mxu0
      %v740 = vadd.f32 %v296, %v739
      %741 = vdwg.mxu0
      %vm742 = vcmp.ge.f32.partialorder %v583, 0.0
      %vm743 = vcmp.ge.f32.partialorder %v585, 0.0
      %vm744 = vcmp.ge.f32.partialorder %v588, 0.0
      %vm745 = vcmp.ge.f32.partialorder %v590, 0.0
      %vm746 = vcmp.ge.f32.partialorder %v593, 0.0
      %vm747 = vcmp.ge.f32.partialorder %v595, 0.0
      %vm748 = vcmp.ge.f32.partialorder %v598, 0.0
      %vm749 = vcmp.ge.f32.partialorder %v600, 0.0
      %vm750 = vcmp.ge.f32.partialorder %v603, 0.0
      %vm751 = vcmp.ge.f32.partialorder %v605, 0.0
      %vm752 = vcmp.ge.f32.partialorder %v608, 0.0
      %vm753 = vcmp.ge.f32.partialorder %v610, 0.0
      %vm754 = vcmp.ge.f32.partialorder %v613, 0.0
      %vm755 = vcmp.ge.f32.partialorder %v615, 0.0
      %vm756 = vcmp.ge.f32.partialorder %v618, 0.0
      %vm757 = vcmp.ge.f32.partialorder %v620, 0.0
      %vm758 = vcmp.ge.f32.partialorder %v623, 0.0
      %vm759 = vcmp.ge.f32.partialorder %v625, 0.0
      %vm760 = vcmp.ge.f32.partialorder %v628, 0.0
      %vm761 = vcmp.ge.f32.partialorder %v630, 0.0
      %vm762 = vcmp.ge.f32.partialorder %v633, 0.0
      %vm763 = vcmp.ge.f32.partialorder %v635, 0.0
      %vm764 = vcmp.ge.f32.partialorder %v638, 0.0
      %vm765 = vcmp.ge.f32.partialorder %v640, 0.0
      %vm766 = vcmp.ge.f32.partialorder %v643, 0.0
      %vm767 = vcmp.ge.f32.partialorder %v645, 0.0
      %vm768 = vcmp.ge.f32.partialorder %v648, 0.0
      %vm769 = vcmp.ge.f32.partialorder %v650, 0.0
      %vm770 = vcmp.ge.f32.partialorder %v653, 0.0
      %vm771 = vcmp.ge.f32.partialorder %v655, 0.0
      %vm772 = vcmp.ge.f32.partialorder %v658, 0.0
      %vm773 = vcmp.ge.f32.partialorder %v660, 0.0
      %vm774 = vcmp.ge.f32.partialorder %v663, 0.0
      %vm775 = vcmp.ge.f32.partialorder %v665, 0.0
      %vm776 = vcmp.ge.f32.partialorder %v668, 0.0
      %vm777 = vcmp.ge.f32.partialorder %v670, 0.0
      %vm778 = vcmp.ge.f32.partialorder %v673, 0.0
      %vm779 = vcmp.ge.f32.partialorder %v675, 0.0
      %vm780 = vcmp.ge.f32.partialorder %v678, 0.0
      %vm781 = vcmp.ge.f32.partialorder %v680, 0.0
      %vm782 = vcmp.ge.f32.partialorder %v683, 0.0
      %vm783 = vcmp.ge.f32.partialorder %v685, 0.0
      %vm784 = vcmp.ge.f32.partialorder %v688, 0.0
      %vm785 = vcmp.ge.f32.partialorder %v690, 0.0
      %vm786 = vcmp.ge.f32.partialorder %v693, 0.0
      %vm787 = vcmp.ge.f32.partialorder %v695, 0.0
      %vm788 = vcmp.ge.f32.partialorder %v698, 0.0
      %vm789 = vcmp.ge.f32.partialorder %v700, 0.0
      %vm790 = vcmp.ge.f32.partialorder %v703, 0.0
      %vm791 = vcmp.ge.f32.partialorder %v705, 0.0
      %vm792 = vcmp.ge.f32.partialorder %v708, 0.0
      %vm793 = vcmp.ge.f32.partialorder %v710, 0.0
      %vm794 = vcmp.ge.f32.partialorder %v713, 0.0
      %vm795 = vcmp.ge.f32.partialorder %v715, 0.0
      %vm796 = vcmp.ge.f32.partialorder %v718, 0.0
      %vm797 = vcmp.ge.f32.partialorder %v720, 0.0
      %vm798 = vcmp.ge.f32.partialorder %v723, 0.0
      %vm799 = vcmp.ge.f32.partialorder %v725, 0.0
      %vm800 = vcmp.ge.f32.partialorder %v728, 0.0
      %vm801 = vcmp.ge.f32.partialorder %v730, 0.0
      %vm802 = vcmp.ge.f32.partialorder %v733, 0.0
      %vm803 = vcmp.ge.f32.partialorder %v735, 0.0
      %vm804 = vcmp.ge.f32.partialorder %v738, 0.0
      %vm805 = vcmp.ge.f32.partialorder %v740, 0.0
      %v806 = vmul.f32 %v583, 0.1
      %v807 = vmul.f32 %v585, 0.1
      %v808 = vmul.f32 %v588, 0.1
      %v809 = vmul.f32 %v590, 0.1
      %v810 = vmul.f32 %v593, 0.1
      %v811 = vmul.f32 %v595, 0.1
      %v812 = vmul.f32 %v598, 0.1
      %v813 = vmul.f32 %v600, 0.1
      %v814 = vmul.f32 %v603, 0.1
      %v815 = vmul.f32 %v605, 0.1
      %v816 = vmul.f32 %v608, 0.1
      %v817 = vmul.f32 %v610, 0.1
      %v818 = vmul.f32 %v613, 0.1
      %v819 = vmul.f32 %v615, 0.1
      %v820 = vmul.f32 %v618, 0.1
      %v821 = vmul.f32 %v620, 0.1
      %v822 = vmul.f32 %v623, 0.1
      %v823 = vmul.f32 %v625, 0.1
      %v824 = vmul.f32 %v628, 0.1
      %v825 = vmul.f32 %v630, 0.1
      %v826 = vmul.f32 %v633, 0.1
      %v827 = vmul.f32 %v635, 0.1
      %v828 = vmul.f32 %v638, 0.1
      %v829 = vmul.f32 %v640, 0.1
      %v830 = vmul.f32 %v643, 0.1
      %v831 = vmul.f32 %v645, 0.1
      %v832 = vmul.f32 %v648, 0.1
      %v833 = vmul.f32 %v650, 0.1
      %v834 = vmul.f32 %v653, 0.1
      %v835 = vmul.f32 %v655, 0.1
      %v836 = vmul.f32 %v658, 0.1
      %v837 = vmul.f32 %v660, 0.1
      %v838 = vmul.f32 %v663, 0.1
      %v839 = vmul.f32 %v665, 0.1
      %v840 = vmul.f32 %v668, 0.1
      %v841 = vmul.f32 %v670, 0.1
      %v842 = vmul.f32 %v673, 0.1
      %v843 = vmul.f32 %v675, 0.1
      %v844 = vmul.f32 %v678, 0.1
      %v845 = vmul.f32 %v680, 0.1
      %v846 = vmul.f32 %v683, 0.1
      %v847 = vmul.f32 %v685, 0.1
      %v848 = vmul.f32 %v688, 0.1
      %v849 = vmul.f32 %v690, 0.1
      %v850 = vmul.f32 %v693, 0.1
      %v851 = vmul.f32 %v695, 0.1
      %v852 = vmul.f32 %v698, 0.1
      %v853 = vmul.f32 %v700, 0.1
      %v854 = vmul.f32 %v703, 0.1
      %v855 = vmul.f32 %v705, 0.1
      %v856 = vmul.f32 %v708, 0.1
      %v857 = vmul.f32 %v710, 0.1
      %v858 = vmul.f32 %v713, 0.1
      %v859 = vmul.f32 %v715, 0.1
      %v860 = vmul.f32 %v718, 0.1
      %v861 = vmul.f32 %v720, 0.1
      %v862 = vmul.f32 %v723, 0.1
      %v863 = vmul.f32 %v725, 0.1
      %v864 = vmul.f32 %v728, 0.1
      %v865 = vmul.f32 %v730, 0.1
      %v866 = vmul.f32 %v733, 0.1
      %v867 = vmul.f32 %v735, 0.1
      %v868 = vmul.f32 %v738, 0.1
      %v869 = vmul.f32 %v740, 0.1
      %v870 = vsel %vm742, %v583, %v806
      %v871 = vsel %vm743, %v585, %v807
      %v872 = vsel %vm744, %v588, %v808
      %v873 = vsel %vm745, %v590, %v809
      %v874 = vsel %vm746, %v593, %v810
      %v875 = vsel %vm747, %v595, %v811
      %v876 = vsel %vm748, %v598, %v812
      %v877 = vsel %vm749, %v600, %v813
      %v878 = vsel %vm750, %v603, %v814
      %v879 = vsel %vm751, %v605, %v815
      %v880 = vsel %vm752, %v608, %v816
      %v881 = vsel %vm753, %v610, %v817
      %v882 = vsel %vm754, %v613, %v818
      %v883 = vsel %vm755, %v615, %v819
      %v884 = vsel %vm756, %v618, %v820
      %v885 = vsel %vm757, %v620, %v821
      %v886 = vsel %vm758, %v623, %v822
      %v887 = vsel %vm759, %v625, %v823
      %v888 = vsel %vm760, %v628, %v824
      %v889 = vsel %vm761, %v630, %v825
      %v890 = vsel %vm762, %v633, %v826
      %v891 = vsel %vm763, %v635, %v827
      %v892 = vsel %vm764, %v638, %v828
      %v893 = vsel %vm765, %v640, %v829
      %v894 = vsel %vm766, %v643, %v830
      %v895 = vsel %vm767, %v645, %v831
      %v896 = vsel %vm768, %v648, %v832
      %v897 = vsel %vm769, %v650, %v833
      %v898 = vsel %vm770, %v653, %v834
      %v899 = vsel %vm771, %v655, %v835
      %v900 = vsel %vm772, %v658, %v836
      %v901 = vsel %vm773, %v660, %v837
      %v902 = vsel %vm774, %v663, %v838
      %v903 = vsel %vm775, %v665, %v839
      %v904 = vsel %vm776, %v668, %v840
      %v905 = vsel %vm777, %v670, %v841
      %v906 = vsel %vm778, %v673, %v842
      %v907 = vsel %vm779, %v675, %v843
      %v908 = vsel %vm780, %v678, %v844
      %v909 = vsel %vm781, %v680, %v845
      %v910 = vsel %vm782, %v683, %v846
      %v911 = vsel %vm783, %v685, %v847
      %v912 = vsel %vm784, %v688, %v848
      %v913 = vsel %vm785, %v690, %v849
      %v914 = vsel %vm786, %v693, %v850
      %v915 = vsel %vm787, %v695, %v851
      %v916 = vsel %vm788, %v698, %v852
      %v917 = vsel %vm789, %v700, %v853
      %v918 = vsel %vm790, %v703, %v854
      %v919 = vsel %vm791, %v705, %v855
      %v920 = vsel %vm792, %v708, %v856
      %v921 = vsel %vm793, %v710, %v857
      %v922 = vsel %vm794, %v713, %v858
      %v923 = vsel %vm795, %v715, %v859
      %v924 = vsel %vm796, %v718, %v860
      %v925 = vsel %vm797, %v720, %v861
      %v926 = vsel %vm798, %v723, %v862
      %v927 = vsel %vm799, %v725, %v863
      %v928 = vsel %vm800, %v728, %v864
      %v929 = vsel %vm801, %v730, %v865
      %v930 = vsel %vm802, %v733, %v866
      %v931 = vsel %vm803, %v735, %v867
      %v932 = vsel %vm804, %v738, %v868
      %v933 = vsel %vm805, %v740, %v869
      %v934 = vpack.c.bf16 %v870, %v870
      %v935 = vpack.c.bf16 %v871, %v871
      %v936 = vpack.c.bf16 %v872, %v872
      %v937 = vpack.c.bf16 %v873, %v873
      %v938 = vpack.c.bf16 %v874, %v874
      %v939 = vpack.c.bf16 %v875, %v875
      %v940 = vpack.c.bf16 %v876, %v876
      %v941 = vpack.c.bf16 %v877, %v877
      %v942 = vpack.c.bf16 %v878, %v878
      %v943 = vpack.c.bf16 %v879, %v879
      %v944 = vpack.c.bf16 %v880, %v880
      %v945 = vpack.c.bf16 %v881, %v881
      %v946 = vpack.c.bf16 %v882, %v882
      %v947 = vpack.c.bf16 %v883, %v883
      %v948 = vpack.c.bf16 %v884, %v884
      %v949 = vpack.c.bf16 %v885, %v885
      %v950 = vpack.c.bf16 %v886, %v886
      %v951 = vpack.c.bf16 %v887, %v887
      %v952 = vpack.c.bf16 %v888, %v888
      %v953 = vpack.c.bf16 %v889, %v889
      %v954 = vpack.c.bf16 %v890, %v890
      %v955 = vpack.c.bf16 %v891, %v891
      %v956 = vpack.c.bf16 %v892, %v892
      %v957 = vpack.c.bf16 %v893, %v893
      %v958 = vpack.c.bf16 %v894, %v894
      %v959 = vpack.c.bf16 %v895, %v895
      %v960 = vpack.c.bf16 %v896, %v896
      %v961 = vpack.c.bf16 %v897, %v897
      %v962 = vpack.c.bf16 %v898, %v898
      %v963 = vpack.c.bf16 %v899, %v899
      %v964 = vpack.c.bf16 %v900, %v900
      %v965 = vpack.c.bf16 %v901, %v901
      %v966 = vpack.c.bf16 %v902, %v902
      %v967 = vpack.c.bf16 %v903, %v903
      %v968 = vpack.c.bf16 %v904, %v904
      %v969 = vpack.c.bf16 %v905, %v905
      %v970 = vpack.c.bf16 %v906, %v906
      %v971 = vpack.c.bf16 %v907, %v907
      %v972 = vpack.c.bf16 %v908, %v908
      %v973 = vpack.c.bf16 %v909, %v909
      %v974 = vpack.c.bf16 %v910, %v910
      %v975 = vpack.c.bf16 %v911, %v911
      %v976 = vpack.c.bf16 %v912, %v912
      %v977 = vpack.c.bf16 %v913, %v913
      %v978 = vpack.c.bf16 %v914, %v914
      %v979 = vpack.c.bf16 %v915, %v915
      %v980 = vpack.c.bf16 %v916, %v916
      %v981 = vpack.c.bf16 %v917, %v917
      %v982 = vpack.c.bf16 %v918, %v918
      %v983 = vpack.c.bf16 %v919, %v919
      %v984 = vpack.c.bf16 %v920, %v920
      %v985 = vpack.c.bf16 %v921, %v921
      %v986 = vpack.c.bf16 %v922, %v922
      %v987 = vpack.c.bf16 %v923, %v923
      %v988 = vpack.c.bf16 %v924, %v924
      %v989 = vpack.c.bf16 %v925, %v925
      %v990 = vpack.c.bf16 %v926, %v926
      %v991 = vpack.c.bf16 %v927, %v927
      %v992 = vpack.c.bf16 %v928, %v928
      %v993 = vpack.c.bf16 %v929, %v929
      %v994 = vpack.c.bf16 %v930, %v930
      %v995 = vpack.c.bf16 %v931, %v931
      %v996 = vpack.c.bf16 %v932, %v932
      %v997 = vpack.c.bf16 %v933, %v933
      %vm998 = vcmask 125952
      %999 = vst.msk [vmem:[%s223] sm:$0xf] %vm998, %v934
      %1000 = vst.msk [vmem:[%s223 + $0x4] sm:$0xf] %vm998, %v935
      %1001 = vst.msk [vmem:[%s223 + $0x8] sm:$0xf] %vm998, %v936
      %1002 = vst.msk [vmem:[%s223 + $0xc] sm:$0xf] %vm998, %v937
      %1003 = vst.msk [vmem:[%s223 + $0x10] sm:$0xf] %vm998, %v938
      %1004 = vst.msk [vmem:[%s223 + $0x14] sm:$0xf] %vm998, %v939
      %1005 = vst.msk [vmem:[%s223 + $0x18] sm:$0xf] %vm998, %v940
      %1006 = vst.msk [vmem:[%s223 + $0x1c] sm:$0xf] %vm998, %v941
      %1007 = vst.msk [vmem:[%s223 + $0x20] sm:$0xf] %vm998, %v942
      %1008 = vst.msk [vmem:[%s223 + $0x24] sm:$0xf] %vm998, %v943
      %1009 = vst.msk [vmem:[%s223 + $0x28] sm:$0xf] %vm998, %v944
      %1010 = vst.msk [vmem:[%s223 + $0x2c] sm:$0xf] %vm998, %v945
      %1011 = vst.msk [vmem:[%s223 + $0x30] sm:$0xf] %vm998, %v946
      %1012 = vst.msk [vmem:[%s223 + $0x34] sm:$0xf] %vm998, %v947
      %1013 = vst.msk [vmem:[%s223 + $0x38] sm:$0xf] %vm998, %v948
      %1014 = vst.msk [vmem:[%s223 + $0x3c] sm:$0xf] %vm998, %v949
      %1015 = vst.msk [vmem:[%s223 + $0x40] sm:$0xf] %vm998, %v950
      %1016 = vst.msk [vmem:[%s223 + $0x44] sm:$0xf] %vm998, %v951
      %1017 = vst.msk [vmem:[%s223 + $0x48] sm:$0xf] %vm998, %v952
      %1018 = vst.msk [vmem:[%s223 + $0x4c] sm:$0xf] %vm998, %v953
      %1019 = vst.msk [vmem:[%s223 + $0x50] sm:$0xf] %vm998, %v954
      %1020 = vst.msk [vmem:[%s223 + $0x54] sm:$0xf] %vm998, %v955
      %1021 = vst.msk [vmem:[%s223 + $0x58] sm:$0xf] %vm998, %v956
      %1022 = vst.msk [vmem:[%s223 + $0x5c] sm:$0xf] %vm998, %v957
      %1023 = vst.msk [vmem:[%s223 + $0x60] sm:$0xf] %vm998, %v958
      %1024 = vst.msk [vmem:[%s223 + $0x64] sm:$0xf] %vm998, %v959
      %1025 = vst.msk [vmem:[%s223 + $0x68] sm:$0xf] %vm998, %v960
      %1026 = vst.msk [vmem:[%s223 + $0x6c] sm:$0xf] %vm998, %v961
      %1027 = vst.msk [vmem:[%s223 + $0x70] sm:$0xf] %vm998, %v962
      %1028 = vst.msk [vmem:[%s223 + $0x74] sm:$0xf] %vm998, %v963
      %1029 = vst.msk [vmem:[%s223 + $0x78] sm:$0xf] %vm998, %v964
      %1030 = vst.msk [vmem:[%s223 + $0x7c] sm:$0xf] %vm998, %v965
      %1031 = vst.msk [vmem:[%s223 + $0x80] sm:$0xf] %vm998, %v966
      %1032 = vst.msk [vmem:[%s223 + $0x84] sm:$0xf] %vm998, %v967
      %1033 = vst.msk [vmem:[%s223 + $0x88] sm:$0xf] %vm998, %v968
      %1034 = vst.msk [vmem:[%s223 + $0x8c] sm:$0xf] %vm998, %v969
      %1035 = vst.msk [vmem:[%s223 + $0x90] sm:$0xf] %vm998, %v970
      %1036 = vst.msk [vmem:[%s223 + $0x94] sm:$0xf] %vm998, %v971
      %1037 = vst.msk [vmem:[%s223 + $0x98] sm:$0xf] %vm998, %v972
      %1038 = vst.msk [vmem:[%s223 + $0x9c] sm:$0xf] %vm998, %v973
      %1039 = vst.msk [vmem:[%s223 + $0xa0] sm:$0xf] %vm998, %v974
      %1040 = vst.msk [vmem:[%s223 + $0xa4] sm:$0xf] %vm998, %v975
      %1041 = vst.msk [vmem:[%s223 + $0xa8] sm:$0xf] %vm998, %v976
      %1042 = vst.msk [vmem:[%s223 + $0xac] sm:$0xf] %vm998, %v977
      %1043 = vst.msk [vmem:[%s223 + $0xb0] sm:$0xf] %vm998, %v978
      %1044 = vst.msk [vmem:[%s223 + $0xb4] sm:$0xf] %vm998, %v979
      %1045 = vst.msk [vmem:[%s223 + $0xb8] sm:$0xf] %vm998, %v980
      %1046 = vst.msk [vmem:[%s223 + $0xbc] sm:$0xf] %vm998, %v981
      %1047 = vst.msk [vmem:[%s223 + $0xc0] sm:$0xf] %vm998, %v982
      %1048 = vst.msk [vmem:[%s223 + $0xc4] sm:$0xf] %vm998, %v983
      %1049 = vst.msk [vmem:[%s223 + $0xc8] sm:$0xf] %vm998, %v984
      %1050 = vst.msk [vmem:[%s223 + $0xcc] sm:$0xf] %vm998, %v985
      %1051 = vst.msk [vmem:[%s223 + $0xd0] sm:$0xf] %vm998, %v986
      %1052 = vst.msk [vmem:[%s223 + $0xd4] sm:$0xf] %vm998, %v987
      %1053 = vst.msk [vmem:[%s223 + $0xd8] sm:$0xf] %vm998, %v988
      %1054 = vst.msk [vmem:[%s223 + $0xdc] sm:$0xf] %vm998, %v989
      %1055 = vst.msk [vmem:[%s223 + $0xe0] sm:$0xf] %vm998, %v990
      %1056 = vst.msk [vmem:[%s223 + $0xe4] sm:$0xf] %vm998, %v991
      %1057 = vst.msk [vmem:[%s223 + $0xe8] sm:$0xf] %vm998, %v992
      %1058 = vst.msk [vmem:[%s223 + $0xec] sm:$0xf] %vm998, %v993
      %1059 = vst.msk [vmem:[%s223 + $0xf0] sm:$0xf] %vm998, %v994
      %1060 = vst.msk [vmem:[%s223 + $0xf4] sm:$0xf] %vm998, %v995
      %1061 = vst.msk [vmem:[%s223 + $0xf8] sm:$0xf] %vm998, %v996
      %1062 = vst.msk [vmem:[%s223 + $0xfc] sm:$0xf] %vm998, %v997
      %s1063 = smul.u32 64, %s18
      %p1064 = scmp.lt.s32.totalorder %s1063, 127
      %s1065 = scalar_select %p1064, %s1063, 127
      %p1066 = scmp.lt.s32.totalorder %s19, 0
      %s1067 = scalar_select %p1066, %s19, 0
      %s1068 = sadd.s32 %s1067, %s1065
      %s1069 = smul.addr %s1068, 4
      %s1070 = scalar_lea.vmem %s3, %s1069
      // Predicated region
      $region33: #{tpu_custom_call.1} parent=31 // pred_check
        %p1071 = pneg %p124
      $region34: #{tpu_custom_call.1} parent=31 // pred_check_branch
        %1073 = sbr.rel (%p1071) target = $region36
      $region35: #{tpu_custom_call.1} parent=31 // pred_region
        %s1074 = smul.u32 64, %s18
      $region36: #{tpu_custom_call.1} parent=31 // pred_fallthru
        _
    $region32: #{tpu_custom_call.1} parent=5 // pred_fallthru
      _
    %p1075 = scmp.le.s32.totalorder 2, %s9
    // Predicated region
    $region37: #{tpu_custom_call.1} parent=5 // pred_check
      %p1076 = pneg %p1075
    $region38: #{tpu_custom_call.1} parent=5 // pred_check_branch
      %1078 = sbr.rel (%p1076) target = $region40
    $region39: #{tpu_custom_call.1} parent=5 // pred_region
      %s1079 = ssub.s32 %s9, 2
      // Predicated region
      $region41: #{tpu_custom_call.1} parent=39 // pred_check
        %p1080 = pneg %p130
      $region42: #{tpu_custom_call.1} parent=39 // pred_check_branch
        %1082 = sbr.rel (%p1080) target = $region44
      $region43: #{tpu_custom_call.1} parent=39 // pred_region
        %s1083 = smul.u32 64, %s20
        %p1084 = scmp.lt.s32.totalorder %s1083, 127
        %s1085 = scalar_select %p1084, %s1083, 127
        %p1086 = scmp.lt.s32.totalorder %s21, 0
        %s1087 = scalar_select %p1086, %s21, 0
        %s1088 = sadd.s32 %s1087, %s1085
        %s1089 = smul.addr %s1088, 4
        %s1090 = scalar_lea.vmem %s3, %s1089
      $region44: #{tpu_custom_call.1} parent=39 // pred_fallthru
        _
    $region40: #{tpu_custom_call.1} parent=5 // pred_fallthru
      _
  $region6: #{tpu_custom_call.1} parent=0 // loop_footer
    %s13 = sadd.s32 1, %s9
  $region7: #{tpu_custom_call.1} parent=0 // loop_footer_branch
    %8 = sbr.rel target = $region3
  $region8: #{tpu_custom_call.1} parent=0 // loop_exit
    _

</llo_original>
